<compile_context>
chip_gen: v6e
topology: v6e:2x2x1
jax: 0.10.0
libtpu: 0.0.40
codegen_flags: <defaults>
</compile_context>

<pallas_src>
import functools

import jax
import jax.numpy as jnp
from jax.experimental import pallas as pl
from jax.experimental.pallas import tpu as pltpu


def _round_up(x, m):
    return ((x + m - 1) // m) * m


def _vmem_limit_bytes():
    """Per-generation scoped-VMEM limit (leave ~25% headroom vs physical)."""
    cap = None
    try:
        cap = getattr(pltpu.get_tpu_info(), "vmem_capacity_bytes", None)
    except Exception:
        cap = None
    if not cap or cap <= 0:
        cap = 64 * 1024 * 1024          # conservative fallback (v7x physical)
    return int(min(cap * 3 // 4, 100 * 1024 * 1024))


def _pass1_tiles(n, c_in, hw, dtype_bytes, vmem_limit):
    """Pick (c_tile, t_hw) for the reduction pass from a VMEM budget."""
    hw_pad = _round_up(hw, 128)
    budget = (vmem_limit * 6) // 10        # double-buffered x-block budget

    # Channel tiling: (a) second parallel grid axis so v7x's two TensorCores
    # both get work at batch == 1, (b) decouple the block size from C_in.
    if n == 1 and c_in >= 16:
        c_tile = min(_round_up(pl.cdiv(c_in, 2), 8), c_in)
    else:
        c_tile = c_in
    # Safety: shrink channels until even a 128-lane tile fits the budget.
    while c_tile > 8 and 2 * c_tile * 128 * dtype_bytes > budget:
        c_tile = _round_up(pl.cdiv(c_tile, 2), 8)

    t_hw = budget // (2 * c_tile * dtype_bytes)
    t_hw = max(128, (t_hw // 128) * 128)
    t_hw = min(t_hw, hw_pad)
    return c_tile, t_hw


def _pass2_tile(c_out, c_in, hw, out_dtype_bytes, vmem_limit):
    """Spatial tile for the broadcast-write pass (scales with C_out, not C_in)."""
    hw_pad = _round_up(hw, 128)
    # Resident f32 weight + pooled column + shift (counted double-buffered).
    resident = 2 * (c_out * c_in * 4 + c_in * 4 + c_out * 4)
    budget = (vmem_limit * 6) // 10 - resident
    budget = max(budget, 2 * c_out * 128 * out_dtype_bytes)
    t_hw = budget // (2 * c_out * out_dtype_bytes)
    t_hw = max(128, (t_hw // 128) * 128)
    return min(t_hw, hw_pad)


# ----------------------- Pass 1: spatial-sum reduction -----------------------
def _pool_sum_kernel(x_ref, acc_ref, *, hw, t_hw, num_hw, masked):
    # x_ref:   (c_tile, T1)  one spatial tile of one channel slab of one image
    # acc_ref: (c_tile, 1)   resident f32 accumulator across the hw grid axis
    j = pl.program_id(2)

    @pl.when(j == 0)
    def _():
        acc_ref[...] = jnp.zeros_like(acc_ref)

    ones_col = jnp.ones((t_hw, 1), dtype=x_ref.dtype)

    if masked:
        # Interior tiles: no mask work at all.
        @pl.when(j < num_hw - 1)
        def _():
            acc_ref[...] += jnp.dot(x_ref[...], ones_col,
                                    preferred_element_type=jnp.float32)

        # Last tile: zero the lanes past HW before the MXU dot (garbage in the
        # padded edge region of the VMEM block must not propagate).
        @pl.when(j == num_hw - 1)
        def _():
            x = x_ref[...]
            valid = hw - (num_hw - 1) * t_hw  # static Python int
            lane = jax.lax.broadcasted_iota(jnp.int32, x.shape, 1)
            x = jnp.where(lane < valid, x, jnp.zeros_like(x))
            acc_ref[...] += jnp.dot(x, ones_col,
                                    preferred_element_type=jnp.float32)
    else:
        acc_ref[...] += jnp.dot(x_ref[...], ones_col,
                                preferred_element_type=jnp.float32)


# --------------- Pass 2: fused 1x1 conv + BN + ReLU + broadcast ---------------
def _broadcast_conv_kernel(pooled_ref, w_ref, shift_ref, o_ref):
    # pooled_ref: (C_in, 1) f32 spatial SUM for this image
    # w_ref:      (C_out, C_in) f32 weight with BN scale and 1/HW folded in
    # shift_ref:  (C_out, 1) f32 folded BN shift
    # o_ref:      (C_out, T2) lane-dense output tile
    y = jnp.dot(w_ref[...], pooled_ref[...], preferred_element_type=jnp.float32)
    y = jnp.maximum(y + shift_ref[...], 0.0)
    o_ref[...] = jnp.broadcast_to(y, o_ref.shape).astype(o_ref.dtype)


def aspp_pooling(x, conv_w, bn_gamma, bn_beta, bn_mean, bn_var, eps=1e-5,
                 *, t_hw1=None, t_hw2=None, c_tile=None):
    """x: (N, C_in, H, W) NCHW.  conv_w: (C_out, C_in) (1x1 conv weight squeezed)."""
    n, c_in, h, w = x.shape
    if conv_w.ndim == 4:  # accept PyTorch-style (C_out, C_in, 1, 1)
        conv_w = conv_w.reshape(conv_w.shape[0], conv_w.shape[1])
    c_out = conv_w.shape[0]
    hw = h * w
    dtype_bytes = jnp.dtype(x.dtype).itemsize
    vmem_limit = _vmem_limit_bytes()

    auto_c, auto_t1 = _pass1_tiles(n, c_in, hw, dtype_bytes, vmem_limit)
    c_tile = auto_c if c_tile is None else c_tile
    t_hw1 = auto_t1 if t_hw1 is None else t_hw1
    num_c = pl.cdiv(c_in, c_tile)
    num_hw1 = pl.cdiv(hw, t_hw1)
    masked1 = (hw % t_hw1) != 0

    t_hw2 = (_pass2_tile(c_out, c_in, hw, dtype_bytes, vmem_limit)
             if t_hw2 is None else t_hw2)
    num_hw2 = pl.cdiv(hw, t_hw2)

    x_flat = x.reshape(n, c_in, hw)

    # ---- Pass 1: per-image per-channel spatial sums (N, C_in, 1) in f32 ----
    pooled_sum = pl.pallas_call(
        functools.partial(_pool_sum_kernel, hw=hw, t_hw=t_hw1,
                          num_hw=num_hw1, masked=masked1),
        out_shape=jax.ShapeDtypeStruct((n, c_in, 1), jnp.float32),
        grid=(n, num_c, num_hw1),
        in_specs=[
            pl.BlockSpec((None, c_tile, t_hw1), lambda i, c, j: (i, c, j)),
        ],
        out_specs=pl.BlockSpec((None, c_tile, 1), lambda i, c, j: (i, c, 0)),
        compiler_params=pltpu.CompilerParams(
            dimension_semantics=("parallel", "parallel", "arbitrary"),
            vmem_limit_bytes=vmem_limit),
    )(x_flat)

    # ---- Fold 1/HW and BN into the 1x1 conv weight (tiny parameter prep) ----
    scale = bn_gamma.astype(jnp.float32) * jax.lax.rsqrt(
        bn_var.astype(jnp.float32) + eps)
    shift = (bn_beta.astype(jnp.float32)
             - bn_mean.astype(jnp.float32) * scale).reshape(c_out, 1)
    w_eff = conv_w.astype(jnp.float32) * (scale / hw)[:, None]   # (C_out, C_in)

    # ---- Pass 2: fused conv+BN+ReLU, then broadcast over the spatial axis ----
    out_flat = pl.pallas_call(
        _broadcast_conv_kernel,
        out_shape=jax.ShapeDtypeStruct((n, c_out, hw), x.dtype),
        grid=(n, num_hw2),
        in_specs=[
            pl.BlockSpec((None, c_in, 1), lambda i, j: (i, 0, 0)),  # pooled sums
            pl.BlockSpec((c_out, c_in), lambda i, j: (0, 0)),       # resident weight
            pl.BlockSpec((c_out, 1), lambda i, j: (0, 0)),          # resident shift
        ],
        out_specs=pl.BlockSpec((None, c_out, t_hw2), lambda i, j: (i, 0, j)),
        compiler_params=pltpu.CompilerParams(
            dimension_semantics=("parallel", "parallel"),
            vmem_limit_bytes=vmem_limit),
    )(pooled_sum, w_eff, shift)

    return out_flat.reshape(n, c_out, h, w)


def aspp_pooling_ref(x, conv_w, bn_gamma, bn_beta, bn_mean, bn_var, eps=1e-5):
    """Pure-JAX reference mirroring the PyTorch forward (1x1 pool -> conv ->
    BN -> ReLU -> upsample; for a 1x1 source any interpolate mode is a
    constant broadcast)."""
    pooled = jnp.mean(x, axis=(2, 3))                       # (N, C_in)
    z = pooled @ conv_w.T                                   # (N, C_out)
    z = (z - bn_mean) / jnp.sqrt(bn_var + eps) * bn_gamma + bn_beta
    z = jnp.maximum(z, 0.0)
    h, w = x.shape[2], x.shape[3]
    return jnp.broadcast_to(z[:, :, None, None],
                            (x.shape[0], conv_w.shape[0], h, w))


if __name__ == "__main__":
    key = jax.random.PRNGKey(0)
    k_x, k_w, k_g, k_b, k_m, k_v = jax.random.split(key, 6)

    N, C_in, C_out = 2, 16, 8
    conv_w = jax.random.normal(k_w, (C_out, C_in), dtype=jnp.float32) * 0.5
    bn_gamma = 1.0 + 0.1 * jax.random.normal(k_g, (C_out,), dtype=jnp.float32)
    bn_beta = 0.1 * jax.random.normal(k_b, (C_out,), dtype=jnp.float32)
    bn_mean = 0.1 * jax.random.normal(k_m, (C_out,), dtype=jnp.float32)
    bn_var = jnp.abs(jax.random.normal(k_v, (C_out,), dtype=jnp.float32)) + 0.5

    # Cases exercise: auto single-tile; forced multi-hw-tile accumulation with a
    # masked tail; explicit channel tiling; and batch==1 (auto channel split).
    cases = [
        dict(hw=(16, 16), n=N, kw={}),
        dict(hw=(15, 15), n=N, kw=dict(t_hw1=128, t_hw2=128)),
        dict(hw=(32, 32), n=N, kw=dict(c_tile=8)),
        dict(hw=(16, 16), n=1, kw={}),
    ]
    for case in cases:
        H, W = case["hw"]
        xk = jax.random.fold_in(k_x, H * 1000 + W + case["n"])
        x = jax.random.normal(xk, (case["n"], C_in, H, W), dtype=jnp.float32)

        out = jax.block_until_ready(
            aspp_pooling(x, conv_w, bn_gamma, bn_beta, bn_mean, bn_var,
                         **case["kw"]))
        ref = aspp_pooling_ref(x, conv_w, bn_gamma, bn_beta, bn_mean, bn_var)

        assert out.shape == ref.shape
        assert jnp.allclose(out, ref, atol=1e-4, rtol=1e-4), \
            f"mismatch at case {case}"

    print("KERNEL_OK")
</pallas_src>

<mosaic_0001>
module attributes {stable_mosaic.version = 11 : i64} {
  func.func @_pool_sum_kernel(%arg0: i32, %arg1: i32, %arg2: i32, %arg3: memref<1x16x256xf32, #tpu.memory_space<vmem>>, %arg4: memref<1x16x1xf32, #tpu.memory_space<vmem>>) attributes {dimension_semantics = [#tpu.dimension_semantics<parallel>, #tpu.dimension_semantics<parallel>, #tpu.dimension_semantics<arbitrary>], iteration_bounds = array<i64: 2, 1, 1>, scalar_prefetch = 0 : i64, scratch_operands = 0 : i64, tpu.core_type = #tpu.core_type<tc>, window_params = [{transform_indices = @transform_0, window_bounds = array<i64: 1, 16, 256>}, {transform_indices = @transform_1, window_bounds = array<i64: 1, 16, 1>}]} {
    %c0_i32 = arith.constant 0 : i32
    %0 = arith.cmpi eq, %arg2, %c0_i32 : i32
    %1 = arith.extui %0 : i1 to i32
    %c0_i32_0 = arith.constant 0 : i32
    %2 = arith.cmpi ne, %1, %c0_i32_0 : i32
    scf.if %2 {
      %cst_10 = arith.constant 0.000000e+00 : f32
      %13 = vector.broadcast %cst_10 : f32 to vector<16x1xf32>
      %c0_11 = arith.constant 0 : index
      %c0_12 = arith.constant 0 : index
      %c0_13 = arith.constant 0 : index
      %14 = vector.load %arg4[%c0_11, %c0_12, %c0_13] : memref<1x16x1xf32, #tpu.memory_space<vmem>>, vector<1x16x1xf32>
      %15 = vector.shape_cast %14 : vector<1x16x1xf32> to vector<16x1xf32>
      %16 = vector.shape_cast %13 : vector<16x1xf32> to vector<1x16x1xf32>
      tpu.vector_store %arg4[%c0_11, %c0_12, %c0_13], %16 {strides = array<i32>} : memref<1x16x1xf32, #tpu.memory_space<vmem>>, vector<1x16x1xf32>,
    } else {
    }
    %cst = arith.constant 1.000000e+00 : f32
    %3 = vector.broadcast %cst : f32 to vector<256x1xf32>
    %c0 = arith.constant 0 : index
    %c0_1 = arith.constant 0 : index
    %c0_2 = arith.constant 0 : index
    %4 = vector.load %arg4[%c0, %c0_1, %c0_2] : memref<1x16x1xf32, #tpu.memory_space<vmem>>, vector<1x16x1xf32>
    %5 = vector.shape_cast %4 : vector<1x16x1xf32> to vector<16x1xf32>
    %c0_3 = arith.constant 0 : index
    %c0_4 = arith.constant 0 : index
    %c0_5 = arith.constant 0 : index
    %6 = vector.load %arg3[%c0_3, %c0_4, %c0_5] : memref<1x16x256xf32, #tpu.memory_space<vmem>>, vector<1x16x256xf32>
    %7 = vector.shape_cast %6 : vector<1x16x256xf32> to vector<16x256xf32>
    %cst_6 = arith.constant dense<0.000000e+00> : vector<16x1xf32>
    %8 = tpu.matmul %7, %3, %cst_6 {dimension_numbers = #tpu.dot_dimension_numbers<[1], [0], [0], [1], [0, 0, 1, 1], [], []>} : vector<16x256xf32>, vector<256x1xf32>, vector<16x1xf32> -> vector<16x1xf32>
    %9 = arith.addf %5, %8 : vector<16x1xf32>
    %c0_7 = arith.constant 0 : index
    %c0_8 = arith.constant 0 : index
    %c0_9 = arith.constant 0 : index
    %10 = vector.load %arg4[%c0_7, %c0_8, %c0_9] : memref<1x16x1xf32, #tpu.memory_space<vmem>>, vector<1x16x1xf32>
    %11 = vector.shape_cast %10 : vector<1x16x1xf32> to vector<16x1xf32>
    %12 = vector.shape_cast %9 : vector<16x1xf32> to vector<1x16x1xf32>
    tpu.vector_store %arg4[%c0_7, %c0_8, %c0_9], %12 {strides = array<i32>} : memref<1x16x1xf32, #tpu.memory_space<vmem>>, vector<1x16x1xf32>,
    return
  }
  func.func @transform_0(%arg0: i32, %arg1: i32, %arg2: i32) -> (i32, i32, i32) {
    %c0_i32 = arith.constant 0 : i32
    return %arg0, %arg1, %arg2 : i32, i32, i32
  }
  func.func @transform_1(%arg0: i32, %arg1: i32, %arg2: i32) -> (i32, i32, i32) {
    %c0_i32 = arith.constant 0 : i32
    %c0_i32_0 = arith.constant 0 : i32
    return %arg0, %arg1, %c0_i32 : i32, i32, i32
  }
}

</mosaic_0001>

<llo_original>
// kernel: tpu_custom_call.1
$region0: #{tpu_custom_call.1}
  #allocation0 [shape = 'u32[]', space=smem, size = 0x4, offset = 0x4, fixed_abs, tag = 'smem constant byte address 0x4 - core index']
  #allocation1 [shape = 'u32[144,128]{1,0:T(1,128)}', space=vmem, size = 0x12000, scoped, tag = 'internal scratch']
  %s0 = inlined_call_operand.hbm [shape: f32[2,16,256], index: 0, kind: input, shape index: {}]
  %s1 = inlined_call_operand.vmem [shape: f32[2,16,1], index: 1, kind: output, shape index: {}]
  %s2 = sld [smem:[#allocation0]]
  $region45: #{tpu_custom_call.1} parent=0
    _
  %s4 = ssub.s32 1, %s2
  %s5 = scalar_select 0, %s4, %s2
  $region1: #{tpu_custom_call.1} parent=0
    #allocation2 [shape = 'u8[32768]{0}', space=vmem, size = 0x8000, scoped, tag = 'input window, operand 0']
    #allocation3 [shape = 's32[2]{0}', space=sflag, size = 0x8, scoped, tag = 'scoped memory for tpu_custom_call.1']
    %6 = vsyncpa [#allocation3], 0
    %s7 = scalar_lea.sflag [#allocation3], 1
    %8 = vsyncpa %s7, 0
    loop: start=0, step=1, limit=4
    $region2: #{tpu_custom_call.1} parent=1 // loop_pre_header
      _
    $region3: #{tpu_custom_call.1} parent=1 // loop_header
      %s10 = sphi 0, %s14
      %p11 = scmp.ge.s32.totalorder %s10, 4
      %s17 = sphi 0, %s36
      %s18 = sphi 0, %s32
      %s19 = sphi 0, %s28
      %s20 = sphi 0, %s17
      %s21 = sphi 0, %s18
      %s22 = sphi 0, %s19
      %s23 = sphi 0, %s20
      %s24 = sphi 0, %s21
      %s25 = sphi 0, %s22
      %s43 = sphi 0, %s45
      %s46 = sphi 0, %s43
      %s47 = sphi 0, %s46
      %s63 = sphi 0, %s47
      %s71 = sphi 0, %s73
      %s74 = sphi 0, %s71
      %s75 = sphi 0, %s74
      %s91 = sphi 0, %s75
    $region4: #{tpu_custom_call.1} parent=1 // loop_header_branch
      %13 = sbr.rel (%p11) target = $region8
    $region5: #{tpu_custom_call.1} parent=1 // loop_body
      %s15 = ssub.s32 %s10, 1
      %s16 = ssub.s32 %s10, 2
      %s26 = sadd.s32 1, %s19
      %p27 = scmp.ge.s32.totalorder %s26, 1
      %s28 = scalar_select %p27, 0, %s26
      %s29 = sadd.s32 1, %s18
      %s30 = scalar_select %p27, %s29, %s18
      %p31 = scmp.ge.s32.totalorder %s30, 1
      %s32 = scalar_select %p31, 0, %s30
      %s33 = sadd.s32 1, %s17
      %s34 = scalar_select %p31, %s33, %s17
      %p35 = scmp.ge.s32.totalorder %s34, 2
      %s36 = scalar_select %p35, 0, %s34
      %s37 = ssub.s32 %s17, %s36
      %s38 = ssub.s32 %s18, %s32
      %s39 = sor.u32 %s37, %s38
      %s40 = ssub.s32 %s19, %s28
      %s41 = sor.u32 %s39, %s40
      %p42 = scmp.eq.s32.totalorder %s41, 0
      %s44 = sadd.s32 %s43, 1
      %s45 = scalar_select %p42, %s43, %s44
      %p48 = pneg %p42
      %p49 = scmp.eq.s32.totalorder %s10, 1
      %p50 = por %p48, %p49
      %p51 = scmp.ne.s32.totalorder %s43, %s46
      %p52 = scmp.eq.s32.totalorder %s10, 0
      %p53 = por %p51, %p52
      %p54 = scmp.ne.s32.totalorder %s43, %s46
      %p55 = scmp.eq.s32.totalorder %s15, 1
      %p56 = por %p54, %p55
      %p57 = scmp.ne.s32.totalorder %s46, %s47
      %p58 = scmp.eq.s32.totalorder %s15, 0
      %p59 = por %p57, %p58
      %p60 = scmp.ne.s32.totalorder %s46, %s47
      %p61 = scmp.eq.s32.totalorder %s16, 1
      %p62 = por %p60, %p61
      %p64 = scmp.ne.s32.totalorder %s47, %s63
      %p65 = scmp.eq.s32.totalorder %s16, 0
      %p66 = por %p64, %p65
      %s67 = ssub.s32 %s17, %s36
      %s68 = ssub.s32 %s18, %s32
      %s69 = sor.u32 %s67, %s68
      %p70 = scmp.eq.s32.totalorder %s69, 0
      %s72 = sadd.s32 %s71, 1
      %s73 = scalar_select %p70, %s71, %s72
      %p76 = pneg %p70
      %p77 = scmp.eq.s32.totalorder %s10, 1
      %p78 = por %p76, %p77
      %p79 = scmp.ne.s32.totalorder %s71, %s74
      %p80 = scmp.eq.s32.totalorder %s10, 0
      %p81 = por %p79, %p80
      %p82 = scmp.ne.s32.totalorder %s71, %s74
      %p83 = scmp.eq.s32.totalorder %s15, 1
      %p84 = por %p82, %p83
      %p85 = scmp.ne.s32.totalorder %s74, %s75
      %p86 = scmp.eq.s32.totalorder %s15, 0
      %p87 = por %p85, %p86
      %p88 = scmp.ne.s32.totalorder %s74, %s75
      %p89 = scmp.eq.s32.totalorder %s16, 1
      %p90 = por %p88, %p89
      %p92 = scmp.ne.s32.totalorder %s75, %s91
      %p93 = scmp.eq.s32.totalorder %s16, 0
      %p94 = por %p92, %p93
      %p95 = scmp.le.s32.totalorder 1, %s10
      %p96 = scmp.lt.s32.totalorder %s10, 3
      %p97 = pnand %p95, %p96
      %p98 = pneg %p97
      // Predicated region
      $region9: #{tpu_custom_call.1} parent=5 // pred_check
        _
      $region10: #{tpu_custom_call.1} parent=5 // pred_check_branch
        %100 = sbr.rel (%p97) target = $region12
      $region11: #{tpu_custom_call.1} parent=5 // pred_region
        %s101 = ssub.s32 %s10, 1
      $region12: #{tpu_custom_call.1} parent=5 // pred_fallthru
        _
      %p102 = scmp.lt.s32.totalorder %s10, 2
      // Predicated region
      $region13: #{tpu_custom_call.1} parent=5 // pred_check
        %p103 = pneg %p102
      $region14: #{tpu_custom_call.1} parent=5 // pred_check_branch
        %105 = sbr.rel (%p103) target = $region16
      $region15: #{tpu_custom_call.1} parent=5 // pred_region
        // Predicated region
        $region17: #{tpu_custom_call.1} parent=15 // pred_check
          %p106 = pneg %p53
        $region18: #{tpu_custom_call.1} parent=15 // pred_check_branch
          %108 = sbr.rel (%p106) target = $region20
        $region19: #{tpu_custom_call.1} parent=15 // pred_region
          %s109 = sand.u32 %s43, 1
          %s110 = scalar_lea.sflag [#allocation3], %s109
          %s111 = sand.u32 %s43, 1
          %s112 = smul.addr %s111, 32
          %s113 = scalar_lea.vmem [#allocation2], %s112
          %s114 = smul.u32 2, %s18
          %s115 = smul.u32 2, %s19
          %s117 = ssub.s32 512, 512
          %118 = vsyncadd %s110, %s117
          %s119 = smul.addr %s114, 2
          %s120 = sadd.s32 %s115, %s119
          %s121 = smul.addr %s17, 4
          %s122 = sadd.s32 %s120, %s121
          %s123 = smul.addr %s122, 128
          %s124 = scalar_lea.hbm %s0, %s123
          %s125 = sshll.u32 %s113, 4
          %s126 = int_to_ptr.vmem [resolvable:$true] %s125
          %131 = dma.hbm_to_vmem [thread:$0]  %s124, 512, %s126, %s110, 256, 256, 16
        $region20: #{tpu_custom_call.1} parent=15 // pred_fallthru
          _
      $region16: #{tpu_custom_call.1} parent=5 // pred_fallthru
        _
      %p132 = scmp.le.s32.totalorder 1, %s10
      %p133 = scmp.lt.s32.totalorder %s10, 3
      %p134 = pnand %p132, %p133
      %p135 = pneg %p134
      // Predicated region
      $region21: #{tpu_custom_call.1} parent=5 // pred_check
        _
      $region22: #{tpu_custom_call.1} parent=5 // pred_check_branch
        %137 = sbr.rel (%p134) target = $region24
      $region23: #{tpu_custom_call.1} parent=5 // pred_region
        %s138 = ssub.s32 %s10, 1
        %s139 = sand.u32 %s46, 1
        %s140 = scalar_lea.sflag [#allocation3], %s139
        %s141 = sand.u32 %s46, 1
        %s142 = smul.addr %s141, 32
        %s143 = scalar_lea.vmem [#allocation2], %s142
        // Predicated region
        $region25: #{tpu_custom_call.1} parent=23 // pred_check
          %p144 = pneg %p59
        $region26: #{tpu_custom_call.1} parent=23 // pred_check_branch
          %146 = sbr.rel (%p144) target = $region28
        $region27: #{tpu_custom_call.1} parent=23 // pred_region
          %147 = dma.done %s140, 512
        $region28: #{tpu_custom_call.1} parent=23 // pred_fallthru
          _
        %s148 = sand.u32 %s46, 1
        %s149 = scalar_lea.sflag [#allocation3], %s148
        %s150 = sand.u32 %s46, 1
        %s151 = smul.addr %s150, 32
        %s152 = scalar_lea.vmem [#allocation2], %s151
        %p153 = pneg %p59
        %p154 = pneg %p56
        %p155 = pneg %p87
        %p156 = pneg %p84
        %s157 = smul.u32 2, %s21
        %p158 = scmp.lt.s32.totalorder %s20, 1
        %s159 = scalar_select %p158, %s20, 1
        %p160 = scmp.lt.s32.totalorder %s157, 1
        %s161 = scalar_select %p160, %s157, 1
        %s162 = smul.addr %s159, 2
        %s163 = sadd.s32 %s161, %s162
        %s164 = smul.addr %s163, 8
        %s165 = scalar_lea.vmem %s1, %s164
        %s166 = smul.u32 2, %s21
        %s167 = smul.u32 2, %s22
        %s168 = smul.u32 2, %s21
        %p169 = scmp.lt.s32.totalorder %s20, 1
        %s170 = scalar_select %p169, %s20, 1
        %p171 = scmp.lt.s32.totalorder %s168, 1
        %s172 = scalar_select %p171, %s168, 1
        %s173 = smul.addr %s170, 2
        %s174 = sadd.s32 %s172, %s173
        %s175 = smul.addr %s174, 8
        %s176 = scalar_lea.vmem %s1, %s175
        %s177 = smul.u32 2, %s21
        %p178 = scmp.eq.s32.totalorder %s22, 0
        // Predicated region
        $region29: #{tpu_custom_call.1} parent=23 // pred_check
          %p179 = pneg %p178
        $region30: #{tpu_custom_call.1} parent=23 // pred_check_branch
          %181 = sbr.rel (%p179) target = $region32
        $region31: #{tpu_custom_call.1} parent=23 // pred_region
          %vm182 = vcmask 7168
          %183 = vst.msk [vmem:[%s176] sm:$0xff] %vm182, 0.0
          %184 = vst.msk [vmem:[%s176 + $0x8] sm:$0xff] %vm182, 0.0
        $region32: #{tpu_custom_call.1} parent=23 // pred_fallthru
          _
        %v185 = vld [vmem:[%s176] sm:$0xff]
        %v186 = vld [vmem:[%s176 + $0x8] sm:$0xff]
        %v187 = vld [vmem:[%s143] sm:$0xff]
        %v188 = vld [vmem:[%s143 + $0x8] sm:$0xff]
        %v189 = vld [vmem:[%s143 + $0x10] sm:$0xff]
        %v190 = vld [vmem:[%s143 + $0x18] sm:$0xff]
        %191 = vmatprep.subr.mxu0 0.0
        %192 = vmatpush1.msra.mxu0 1.0
        %193 = vmatprep.subr.mxu0 0.0
        %194 = vmatpush1.msra.mxu0 1.0
        %195 = vmatprep.subr.mxu0 0.0
        %196 = vmatpush1.msra.mxu0 1.0
        %197 = vmatprep.subr.mxu0 0.0
        %198 = vmatpush1.msra.mxu0 1.0
        %199 = vmatprep.subr.mxu0 0.0
        %200 = vmatpush1.msra.mxu0 1.0
        %201 = vmatprep.subr.mxu0 0.0
        %202 = vmatpush1.msra.mxu0 1.0
        %203 = vmatprep.subr.mxu0 0.0
        %204 = vmatpush1.msra.mxu0 1.0
        %205 = vmatprep.subr.mxu0 0.0
        %206 = vmatpush1.msra.mxu0 1.0
        %207 = vmatprep.subr.mxu0 0.0
        %208 = vmatpush1.msra.mxu0 1.0
        %209 = vmatprep.subr.mxu0 0.0
        %210 = vmatpush1.msra.mxu0 1.0
        %211 = vmatprep.subr.mxu0 0.0
        %212 = vmatpush1.msra.mxu0 1.0
        %213 = vmatprep.subr.mxu0 0.0
        %214 = vmatpush1.msra.mxu0 1.0
        %215 = vmatprep.subr.mxu0 0.0
        %216 = vmatpush1.msra.mxu0 1.0
        %217 = vmatprep.subr.mxu0 0.0
        %218 = vmatpush1.msra.mxu0 1.0
        %219 = vmatprep.subr.mxu0 0.0
        %220 = vmatpush1.msra.mxu0 1.0
        %221 = vmatprep.subr.mxu0 0.0
        %222 = vmatpush1.msra.mxu0 1.0
        %223 = vmatprep.subr.mxu0 0.0
        %224 = vmatpush2.msra.mxu0 1.0
        %225 = vmatprep.subr.mxu0 0.0
        %226 = vmatpush2.msra.mxu0 1.0
        %227 = vmatprep.subr.mxu0 0.0
        %228 = vmatpush2.msra.mxu0 1.0
        %229 = vmatprep.subr.mxu0 0.0
        %230 = vmatpush2.msra.mxu0 1.0
        %231 = vmatprep.subr.mxu0 0.0
        %232 = vmatpush2.msra.mxu0 1.0
        %233 = vmatprep.subr.mxu0 0.0
        %234 = vmatpush2.msra.mxu0 1.0
        %235 = vmatprep.subr.mxu0 0.0
        %236 = vmatpush2.msra.mxu0 1.0
        %237 = vmatprep.subr.mxu0 0.0
        %238 = vmatpush2.msra.mxu0 1.0
        %239 = vmatprep.subr.mxu0 0.0
        %240 = vmatpush2.msra.mxu0 1.0
        %241 = vmatprep.subr.mxu0 0.0
        %242 = vmatpush2.msra.mxu0 1.0
        %243 = vmatprep.subr.mxu0 0.0
        %244 = vmatpush2.msra.mxu0 1.0
        %245 = vmatprep.subr.mxu0 0.0
        %246 = vmatpush2.msra.mxu0 1.0
        %247 = vmatprep.subr.mxu0 0.0
        %248 = vmatpush2.msra.mxu0 1.0
        %249 = vmatprep.subr.mxu0 0.0
        %250 = vmatpush2.msra.mxu0 1.0
        %251 = vmatprep.subr.mxu0 0.0
        %252 = vmatpush2.msra.mxu0 1.0
        %253 = vmatprep.subr.mxu0 0.0
        %254 = vmatpush2.msra.mxu0 1.0
        %255 = vmatprep.mubr.f32.mxu0 %v188
        %256 = vmatmul.mubr.f32.gmra.mxu0 %v187
        %v257 = vpop.f32.mrf.mxu0
        %v258 = vadd.f32 0.0, %v257
        %v259 = vpop.f32.mrf.mxu0
        %260 = vmatprep.mubr.f32.mxu0 %v190
        %261 = vmatmul.mubr.f32.gmra.mxu0 %v189
        %v262 = vpop.f32.mrf.mxu0
        %v263 = vadd.f32 0.0, %v262
        %v264 = vpop.f32.mrf.mxu0
        %265 = vdwg.mxu0
        %v266 = vadd.f32 %v185, %v258
        %v267 = vadd.f32 %v186, %v263
        %vm268 = vcmask 7168
        %269 = vst.msk [vmem:[%s176] sm:$0xff] %vm268, %v266
        %270 = vst.msk [vmem:[%s176 + $0x8] sm:$0xff] %vm268, %v267
        %s271 = smul.u32 2, %s21
        %p272 = scmp.lt.s32.totalorder %s20, 1
        %s273 = scalar_select %p272, %s20, 1
        %p274 = scmp.lt.s32.totalorder %s271, 1
        %s275 = scalar_select %p274, %s271, 1
        %s276 = smul.addr %s273, 2
        %s277 = sadd.s32 %s275, %s276
        %s278 = smul.addr %s277, 8
        %s279 = scalar_lea.vmem %s1, %s278
        // Predicated region
        $region33: #{tpu_custom_call.1} parent=23 // pred_check
          %p280 = pneg %p84
        $region34: #{tpu_custom_call.1} parent=23 // pred_check_branch
          %282 = sbr.rel (%p280) target = $region36
        $region35: #{tpu_custom_call.1} parent=23 // pred_region
          %s283 = smul.u32 2, %s21
        $region36: #{tpu_custom_call.1} parent=23 // pred_fallthru
          _
      $region24: #{tpu_custom_call.1} parent=5 // pred_fallthru
        _
      %p284 = scmp.le.s32.totalorder 2, %s10
      // Predicated region
      $region37: #{tpu_custom_call.1} parent=5 // pred_check
        %p285 = pneg %p284
      $region38: #{tpu_custom_call.1} parent=5 // pred_check_branch
        %287 = sbr.rel (%p285) target = $region40
      $region39: #{tpu_custom_call.1} parent=5 // pred_region
        %s288 = ssub.s32 %s10, 2
        // Predicated region
        $region41: #{tpu_custom_call.1} parent=39 // pred_check
          %p289 = pneg %p90
        $region42: #{tpu_custom_call.1} parent=39 // pred_check_branch
          %291 = sbr.rel (%p289) target = $region44
        $region43: #{tpu_custom_call.1} parent=39 // pred_region
          %s292 = smul.u32 2, %s24
          %p293 = scmp.lt.s32.totalorder %s23, 1
          %s294 = scalar_select %p293, %s23, 1
          %p295 = scmp.lt.s32.totalorder %s292, 1
          %s296 = scalar_select %p295, %s292, 1
          %s297 = smul.addr %s294, 2
          %s298 = sadd.s32 %s296, %s297
          %s299 = smul.addr %s298, 8
          %s300 = scalar_lea.vmem %s1, %s299
        $region44: #{tpu_custom_call.1} parent=39 // pred_fallthru
          _
      $region40: #{tpu_custom_call.1} parent=5 // pred_fallthru
        _
    $region6: #{tpu_custom_call.1} parent=1 // loop_footer
      %s14 = sadd.s32 1, %s10
    $region7: #{tpu_custom_call.1} parent=1 // loop_footer_branch
      %9 = sbr.rel target = $region3
    $region8: #{tpu_custom_call.1} parent=1 // loop_exit
      _
    %301 = vsyncpa [#allocation3], 1
    %s302 = scalar_lea.sflag [#allocation3], 1
    %303 = vsyncpa %s302, 1

</llo_original>
